<compile_context>
chip_gen: v6e
topology: v6e:2x2x1
jax: 0.10.0
libtpu: 0.0.40
codegen_flags: <defaults>
</compile_context>

<pallas_src>
import jax
import jax.numpy as jnp
from jax.experimental import pallas as pl
from jax.experimental.pallas import tpu as pltpu


# ~4 MiB blocks: streaming kernels hit ~85-86% of HBM roofline at >=2-4 MiB
# (vs ~63% at 1 MiB); larger only grows the VMEM footprint.
_TARGET_BLOCK_BYTES = 4 * 1024 * 1024
# 2x input + 2x output double-buffered 4 MiB blocks (~16 MiB) plus headroom;
# above the 16/32 MiB scoped defaults, below v7x's 64 MiB physical VMEM.
_VMEM_LIMIT_BYTES = 48 * 1024 * 1024
_LANE = 128


def _sublane_quantum(dtype) -> int:
    """Packed sublane granularity: 8 rows (32-bit), 16 (bf16/f16), 32 (int8/fp8)."""
    itemsize = jnp.dtype(dtype).itemsize
    return {4: 8, 2: 16, 1: 32}.get(itemsize, 8)


def _normalize_kernel(img_ref, scale_ref, bias_ref, out_ref):
    # img_ref:   (tile_r, tile_c) tile of the flattened image
    # scale_ref: (tile_r, 1) or (1, tile_c) f32 -> free VPU broadcast
    # bias_ref:  same shape as scale_ref
    x = img_ref[...].astype(jnp.float32)
    out_ref[...] = (x * scale_ref[...] + bias_ref[...]).astype(out_ref.dtype)


def _select_tiles(rows, cols, itemsize, row_quantum):
    """Byte-budgeted tile shape; ragged edges handled by a cdiv grid."""
    # Lane (last-dim) tile first: keep stores lane-dense.
    budget_c = max(
        _LANE,
        (_TARGET_BLOCK_BYTES // (row_quantum * itemsize)) // _LANE * _LANE,
    )
    tile_c = cols if cols <= budget_c else budget_c  # full dim or 128-multiple
    # Row tile from the remaining byte budget (multiple of the packed quantum).
    budget_r = max(
        row_quantum,
        (_TARGET_BLOCK_BYTES // (tile_c * itemsize)) // row_quantum * row_quantum,
    )
    tile_r = rows if budget_r >= rows else budget_r
    return tile_r, tile_c


def normalization(img, mean, std):
    """(img - mean[:,None,None]) / std[:,None,None] for an NCHW image.

    img:  (N, C, H, W)   mean, std: (C,)
    """
    N, C, H, W = img.shape
    cols = H * W
    itemsize = jnp.dtype(img.dtype).itemsize
    q_r = _sublane_quantum(img.dtype)

    # Fold (x - mean)/std into x*scale + bias (tiny f32 C-length vectors).
    scale_c = 1.0 / std.astype(jnp.float32)
    bias_c = -mean.astype(jnp.float32) * scale_c

    lane_aligned = cols % _LANE == 0
    # Small / misaligned spatial maps: fold channels into the lane axis so the
    # stores stay lane-dense; scale/bias become one per-sample row pattern.
    use_sample_rows = (
        (not lane_aligned)
        and (C * cols) % _LANE == 0
        and C * cols * 4 <= (2 << 20)  # keep the expanded pattern small
    )

    if use_sample_rows:
        rows2, cols2 = N, C * cols
        img2 = img.reshape(rows2, cols2)
        scale = jnp.repeat(scale_c, cols).reshape(1, cols2)
        bias = jnp.repeat(bias_c, cols).reshape(1, cols2)
    else:
        rows2, cols2 = N * C, cols
        img2 = img.reshape(rows2, cols2)          # contiguous NCHW: free reshape
        scale = jnp.tile(scale_c, N).reshape(rows2, 1)   # row r -> channel r % C
        bias = jnp.tile(bias_c, N).reshape(rows2, 1)

    tile_r, tile_c = _select_tiles(rows2, cols2, itemsize, q_r)

    # Row axis leading (megacore-parallel on v7x), column axis innermost so the
    # per-row scale/bias block index is constant across the j sweep.
    grid = (pl.cdiv(rows2, tile_r), pl.cdiv(cols2, tile_c))

    if use_sample_rows:
        sb_block = (1, tile_c)
        sb_map = lambda i, j: (0, j)
    else:
        sb_block = (tile_r, 1)
        sb_map = lambda i, j: (i, 0)

    out2 = pl.pallas_call(
        _normalize_kernel,
        out_shape=jax.ShapeDtypeStruct((rows2, cols2), img.dtype),
        grid_spec=pltpu.PrefetchScalarGridSpec(
            num_scalar_prefetch=0,
            grid=grid,
            in_specs=[
                pl.BlockSpec((tile_r, tile_c), lambda i, j: (i, j)),
                pl.BlockSpec(sb_block, sb_map),
                pl.BlockSpec(sb_block, sb_map),
            ],
            out_specs=pl.BlockSpec((tile_r, tile_c), lambda i, j: (i, j)),
        ),
        compiler_params=pltpu.CompilerParams(
            dimension_semantics=("parallel", "parallel"),
            vmem_limit_bytes=_VMEM_LIMIT_BYTES,
        ),
    )(img2, scale, bias)

    return out2.reshape(N, C, H, W)


if __name__ == "__main__":
    # Small deterministic example: batch=2, channels=4, spatial=16x16.
    N, C, H, W = 2, 4, 16, 16

    key = jax.random.PRNGKey(0)
    img = jax.random.uniform(key, (N, C, H, W), dtype=jnp.float32)

    # Deterministic per-channel mean/std (ImageNet-like, extended to C=4).
    mean = jnp.array([0.485, 0.456, 0.406, 0.500], dtype=jnp.float32)
    std = jnp.array([0.229, 0.224, 0.225, 0.250], dtype=jnp.float32)

    out = normalization(img, mean, std)
    out = jax.block_until_ready(out)

    # Reference check (same semantics as the PyTorch forward).
    ref = (img - mean.reshape(1, C, 1, 1)) / std.reshape(1, C, 1, 1)
    assert jnp.allclose(out, ref, atol=1e-5, rtol=1e-5), "mismatch vs reference"

    print("KERNEL_OK")
</pallas_src>

<mosaic_0001>
module attributes {stable_mosaic.version = 11 : i64} {
  func.func @_normalize_kernel(%arg0: i32, %arg1: i32, %arg2: memref<8x256xf32, #tpu.memory_space<vmem>>, %arg3: memref<8x1xf32, #tpu.memory_space<vmem>>, %arg4: memref<8x1xf32, #tpu.memory_space<vmem>>, %arg5: memref<8x256xf32, #tpu.memory_space<vmem>>) attributes {dimension_semantics = [#tpu.dimension_semantics<parallel>, #tpu.dimension_semantics<parallel>], iteration_bounds = array<i64: 1, 1>, scalar_prefetch = 0 : i64, scratch_operands = 0 : i64, tpu.core_type = #tpu.core_type<tc>, window_params = [{transform_indices = @transform_0, window_bounds = array<i64: 8, 256>}, {transform_indices = @transform_1, window_bounds = array<i64: 8, 1>}, {transform_indices = @transform_2, window_bounds = array<i64: 8, 1>}, {transform_indices = @transform_3, window_bounds = array<i64: 8, 256>}]} {
    %c0 = arith.constant 0 : index
    %c0_0 = arith.constant 0 : index
    %0 = vector.load %arg2[%c0, %c0_0] : memref<8x256xf32, #tpu.memory_space<vmem>>, vector<8x256xf32>
    %c0_1 = arith.constant 0 : index
    %c0_2 = arith.constant 0 : index
    %1 = vector.load %arg3[%c0_1, %c0_2] : memref<8x1xf32, #tpu.memory_space<vmem>>, vector<8x1xf32>
    %2 = vector.broadcast %1 : vector<8x1xf32> to vector<8x256xf32>
    %3 = arith.mulf %0, %2 : vector<8x256xf32>
    %c0_3 = arith.constant 0 : index
    %c0_4 = arith.constant 0 : index
    %4 = vector.load %arg4[%c0_3, %c0_4] : memref<8x1xf32, #tpu.memory_space<vmem>>, vector<8x1xf32>
    %5 = vector.broadcast %4 : vector<8x1xf32> to vector<8x256xf32>
    %6 = arith.addf %3, %5 : vector<8x256xf32>
    %c0_5 = arith.constant 0 : index
    %c0_6 = arith.constant 0 : index
    %7 = vector.load %arg5[%c0_5, %c0_6] : memref<8x256xf32, #tpu.memory_space<vmem>>, vector<8x256xf32>
    tpu.vector_store %arg5[%c0_5, %c0_6], %6 {strides = array<i32>} : memref<8x256xf32, #tpu.memory_space<vmem>>, vector<8x256xf32>,
    return
  }
  func.func @transform_0(%arg0: i32, %arg1: i32) -> (i32, i32) {
    %c0_i32 = arith.constant 0 : i32
    return %arg0, %arg1 : i32, i32
  }
  func.func @transform_1(%arg0: i32, %arg1: i32) -> (i32, i32) {
    %c0_i32 = arith.constant 0 : i32
    %c0_i32_0 = arith.constant 0 : i32
    return %arg0, %c0_i32 : i32, i32
  }
  func.func @transform_2(%arg0: i32, %arg1: i32) -> (i32, i32) {
    %c0_i32 = arith.constant 0 : i32
    %c0_i32_0 = arith.constant 0 : i32
    return %arg0, %c0_i32 : i32, i32
  }
  func.func @transform_3(%arg0: i32, %arg1: i32) -> (i32, i32) {
    %c0_i32 = arith.constant 0 : i32
    return %arg0, %arg1 : i32, i32
  }
}

</mosaic_0001>

<llo_original>
// kernel: tpu_custom_call.1
$region0: #{tpu_custom_call.1}
  #allocation0 [shape = 'u32[]', space=smem, size = 0x4, offset = 0x4, fixed_abs, tag = 'smem constant byte address 0x4 - core index']
  #allocation1 [shape = 'u32[144,128]{1,0:T(1,128)}', space=vmem, size = 0x12000, scoped, tag = 'internal scratch']
  %s0 = inlined_call_operand.vmem [shape: f32[8,256], index: 0, kind: input, shape index: {}]
  %s1 = inlined_call_operand.vmem [shape: f32[8,1], index: 1, kind: input, shape index: {}]
  %s2 = inlined_call_operand.vmem [shape: f32[8,1], index: 2, kind: input, shape index: {}]
  %s3 = inlined_call_operand.hbm [shape: f32[8,256], index: 3, kind: output, shape index: {}]
  %s4 = sld [smem:[#allocation0]]
  $region22: #{tpu_custom_call.1} parent=0
    _
  %s6 = ssub.s32 1, %s4
  %s7 = scalar_select 0, %s6, %s4
  $region1: #{tpu_custom_call.1} parent=0
    #allocation2 [shape = 'u8[8192]{0}', space=vmem, size = 0x2000, scoped, tag = 'output window, operand 0, single buffered']
    #allocation3 [shape = 's32[1]{0}', space=sflag, size = 0x4, scoped, tag = 'scoped memory for tpu_custom_call.1']
    %8 = vsyncpa [#allocation3], 0
    // Predicated region
    $region2: #{tpu_custom_call.1} parent=1 // pred_check
      _
    $region3: #{tpu_custom_call.1} parent=1 // pred_check_branch
      %10 = sbr.rel (0) target = $region5
    $region4: #{tpu_custom_call.1} parent=1 // pred_region
      _
    $region5: #{tpu_custom_call.1} parent=1 // pred_fallthru
      _
    // Predicated region
    $region6: #{tpu_custom_call.1} parent=1 // pred_check
      _
    $region7: #{tpu_custom_call.1} parent=1 // pred_check_branch
      %12 = sbr.rel (0) target = $region9
    $region8: #{tpu_custom_call.1} parent=1 // pred_region
      _
    $region9: #{tpu_custom_call.1} parent=1 // pred_fallthru
      _
    // Predicated region
    $region10: #{tpu_custom_call.1} parent=1 // pred_check
      _
    $region11: #{tpu_custom_call.1} parent=1 // pred_check_branch
      %14 = sbr.rel (0) target = $region13
    $region12: #{tpu_custom_call.1} parent=1 // pred_region
      _
    $region13: #{tpu_custom_call.1} parent=1 // pred_fallthru
      _
    %v15 = vld [vmem:[%s0] sm:$0xff]
    %v16 = vld [vmem:[%s0 + $0x8] sm:$0xff]
    %v17 = vld [vmem:[%s1] sm:$0xff]
    %19 = vset.pattern.permute.xlu0 0
    %20 = vperm.xlu0 %19, %v17
    %v21 = vpop.permute.xlu0 %20
    %v23 = vmul.f32 %v15, %v21
    %v24 = vmul.f32 %v16, %v21
    %v25 = vld [vmem:[%s2] sm:$0xff]
    %27 = vset.pattern.permute.xlu0 0
    %28 = vperm.xlu0 %27, %v25
    %v29 = vpop.permute.xlu0 %28
    %v31 = vadd.f32 %v23, %v29
    %v32 = vadd.f32 %v24, %v29
    %33 = vst [vmem:[#allocation2] sm:$0xff] %v31
    %34 = vst [vmem:[#allocation2 + $0x8] sm:$0xff] %v32
    // Predicated region
    $region14: #{tpu_custom_call.1} parent=1 // pred_check
      _
    $region15: #{tpu_custom_call.1} parent=1 // pred_check_branch
      %36 = sbr.rel (0) target = $region17
    $region16: #{tpu_custom_call.1} parent=1 // pred_region
      %s38 = ssub.s32 256, 256
      %39 = vsyncadd [#allocation3], %s38
      %s41 = sshll.u32 [#allocation2], 4
      %s42 = int_to_ptr.vmem [resolvable:$true] %s41
      %44 = dma.vmem_to_hbm [thread:$0]  %s42, 256, %s3, [#allocation3]
    $region17: #{tpu_custom_call.1} parent=1 // pred_fallthru
      _
    // Predicated region
    $region18: #{tpu_custom_call.1} parent=1 // pred_check
      _
    $region19: #{tpu_custom_call.1} parent=1 // pred_check_branch
      %46 = sbr.rel (0) target = $region21
    $region20: #{tpu_custom_call.1} parent=1 // pred_region
      %47 = dma.done [#allocation3], 256
    $region21: #{tpu_custom_call.1} parent=1 // pred_fallthru
      _
    %48 = vsyncpa [#allocation3], 1

</llo_original>
